<compile_context>
chip_gen: v7x
topology: tpu7x:2x2x1
jax: 0.10.0
libtpu: 0.0.40
codegen_flags: <defaults>
</compile_context>

<pallas_src>
import jax
import jax.numpy as jnp
from jax.experimental import pallas as pl
from jax.experimental.pallas import tpu as pltpu


def _ae_kernel(x_ref, w1_ref, b1_ref, w2_ref, b2_ref, out_ref):
    # x_ref:   (TM, Kp)  lane-dense packed input rows (bf16 or f32)
    # w1_ref:  (Kp, Lp)  block-diagonal packed encoder weight (VMEM-resident)
    # b1_ref:  (1,  Lp)  f32 bias
    # w2_ref:  (Lp, Kp)  block-diagonal packed decoder weight (VMEM-resident)
    # b2_ref:  (1,  Kp)  f32 bias
    # out_ref: (TM, Kp)  packed output rows
    # Encoder: Linear (MXU, bf16 x bf16 -> f32 acc) + ReLU (f32 on VPU)
    h = jnp.dot(x_ref[...], w1_ref[...], preferred_element_type=jnp.float32)
    h = jnp.maximum(h + b1_ref[...], 0.0)
    # Decoder: Linear (MXU) + Sigmoid (EUP); accumulate in f32, cast once on store.
    y = jnp.dot(h.astype(w2_ref.dtype), w2_ref[...],
                preferred_element_type=jnp.float32)
    y = y + b2_ref[...]
    out_ref[...] = jax.nn.sigmoid(y).astype(out_ref.dtype)


def _block_diag(w, n):
    """n copies of w along the diagonal -> (n*rows, n*cols)."""
    if n == 1:
        return w
    eye = jnp.eye(n, dtype=w.dtype)
    r, c = w.shape
    return jnp.einsum("ij,rc->irjc", eye, w).reshape(n * r, n * c)


def model1_variant1_forward(x, w1, b1, w2, b2, num_nodes,
                            edge_index=None, batch_size=None, batch_index=None,
                            *, io_dtype=jnp.bfloat16, block_rows=1024):
    """Pallas forward.  x: any shape whose total size is a multiple of num_nodes.

    Weights are stored transposed vs torch.nn.Linear:
      w1: [num_nodes, latent], w2: [latent, num_nodes]  ->  kernel computes x @ w + b.
    edge_index / batch_size / batch_index are accepted but unused (as in the torch
    forward).  io_dtype controls the HBM-resident dtype of x and the weights.
    NOTE: if bit-level parity with PyTorch f32 Linear is required, use io_dtype=f32
    and pass precision=jax.lax.Precision.HIGHEST to the dots.
    """
    out_dtype = x.dtype
    x2d = x.reshape(-1, num_nodes)            # == x.view(-1, num_nodes)
    M = x2d.shape[0]
    latent = w1.shape[1]

    # ----- lane-dense row packing -------------------------------------------------
    pack = 128 // num_nodes if (num_nodes <= 128 and 128 % num_nodes == 0) else 1
    Kp = pack * num_nodes                     # packed in/out width (128 when packing)
    Lp = pack * latent                        # packed latent width

    # Tile size in *packed* rows; keep large for HBM-roofline, shrink for tiny M.
    packed_rows = pl.cdiv(M, pack)
    tm = min(block_rows, pl.cdiv(packed_rows, 8) * 8)
    tm = max(8, pl.cdiv(tm, 8) * 8)

    rows_per_block = pack * tm
    M_pad = pl.cdiv(M, rows_per_block) * rows_per_block
    if M_pad != M:
        x2d = jnp.pad(x2d, ((0, M_pad - M), (0, 0)))

    xp = x2d.reshape(M_pad // pack, Kp).astype(io_dtype)     # row-major == (M_pad, nn)
    w1p = _block_diag(w1, pack).astype(io_dtype)
    w2p = _block_diag(w2, pack).astype(io_dtype)
    b1p = jnp.tile(b1.reshape(1, latent), (1, pack)).astype(jnp.float32)
    b2p = jnp.tile(b2.reshape(1, num_nodes), (1, pack)).astype(jnp.float32)

    Mp = xp.shape[0]
    grid = (Mp // tm,)

    io_bytes = jnp.dtype(io_dtype).itemsize
    cost = pl.CostEstimate(
        flops=2 * M_pad * (num_nodes * latent + latent * num_nodes),
        transcendentals=M_pad * num_nodes,                       # sigmoid exps
        bytes_accessed=int(xp.size * io_bytes
                           + Mp * Kp * jnp.dtype(out_dtype).itemsize
                           + (w1p.size + w2p.size) * io_bytes),
    )

    out = pl.pallas_call(
        _ae_kernel,
        out_shape=jax.ShapeDtypeStruct((Mp, Kp), out_dtype),
        grid_spec=pltpu.PrefetchScalarGridSpec(
            num_scalar_prefetch=0,
            grid=grid,
            in_specs=[
                pl.BlockSpec((tm, Kp), lambda i: (i, 0)),   # streamed row tiles
                pl.BlockSpec((Kp, Lp), lambda i: (0, 0)),   # resident weights/biases
                pl.BlockSpec((1, Lp), lambda i: (0, 0)),
                pl.BlockSpec((Lp, Kp), lambda i: (0, 0)),
                pl.BlockSpec((1, Kp), lambda i: (0, 0)),
            ],
            out_specs=pl.BlockSpec((tm, Kp), lambda i: (i, 0)),
        ),
        compiler_params=pltpu.CompilerParams(
            dimension_semantics=("parallel",),              # megacore on v7x
        ),
        cost_estimate=cost,
    )(xp, w1p, b1p, w2p, b2p)

    # Packed row-major layout == unpacked row-major layout: free reshape, then trim pad.
    return out.reshape(M_pad, num_nodes)[:M]


def init_params(key, num_nodes, latent_space_dim, dtype=jnp.float32):
    """Deterministic parameter init (stand-in for torch.manual_seed(42) init)."""
    k1, k2, k3, k4 = jax.random.split(key, 4)
    lim1 = 1.0 / jnp.sqrt(num_nodes)
    lim2 = 1.0 / jnp.sqrt(latent_space_dim)
    w1 = jax.random.uniform(k1, (num_nodes, latent_space_dim), dtype, -lim1, lim1)
    b1 = jax.random.uniform(k2, (1, latent_space_dim), dtype, -lim1, lim1)
    w2 = jax.random.uniform(k3, (latent_space_dim, num_nodes), dtype, -lim2, lim2)
    b2 = jax.random.uniform(k4, (1, num_nodes), dtype, -lim2, lim2)
    return w1, b1, w2, b2


if __name__ == "__main__":
    num_nodes = 16
    num_features = 1
    latent_space_dim = 8
    M = 64  # number of "graphs" / rows after view(-1, num_nodes)

    key = jax.random.PRNGKey(0)
    kx, kp = jax.random.split(key)

    # Input: [M * num_nodes, num_features] node-feature matrix (num_features=1),
    # which view(-1, num_nodes) folds into [M, num_nodes].
    x = jax.random.normal(kx, (M * num_nodes, num_features), dtype=jnp.float32)
    edge_index = jnp.zeros((2, 4), dtype=jnp.int32)             # unused (as in torch)
    batch_index = jnp.zeros((M * num_nodes,), dtype=jnp.int32)  # unused

    w1, b1, w2, b2 = init_params(kp, num_nodes, latent_space_dim)

    out = model1_variant1_forward(x, w1, b1, w2, b2, num_nodes,
                                  edge_index=edge_index, batch_size=M,
                                  batch_index=batch_index)
    out = jax.block_until_ready(out)
    assert out.shape == (M, num_nodes)

    # Reference 1: mimics the kernel's bf16-I/O numerics (tight tolerance).
    x2d = x.reshape(-1, num_nodes)
    xb = x2d.astype(jnp.bfloat16)
    w1b, w2b = w1.astype(jnp.bfloat16), w2.astype(jnp.bfloat16)
    h_ref = jnp.maximum(jnp.dot(xb, w1b, preferred_element_type=jnp.float32) + b1, 0.0)
    y_ref = jnp.dot(h_ref.astype(jnp.bfloat16), w2b,
                    preferred_element_type=jnp.float32) + b2
    ref_bf16 = jax.nn.sigmoid(y_ref)
    assert jnp.allclose(out, ref_bf16, atol=1e-4, rtol=1e-4)

    # Reference 2: full-f32 torch-equivalent math (loose tolerance for bf16 storage).
    h32 = jnp.maximum(x2d @ w1 + b1, 0.0)
    ref_f32 = jax.nn.sigmoid(h32 @ w2 + b2)
    assert jnp.allclose(out, ref_f32, atol=2e-2)

    print("KERNEL_OK")
</pallas_src>

<mosaic_0001>
module attributes {stable_mosaic.version = 11 : i64} {
  func.func @_ae_kernel(%arg0: i32, %arg1: memref<8x128xbf16, #tpu.memory_space<vmem>>, %arg2: memref<128x64xbf16, #tpu.memory_space<vmem>>, %arg3: memref<1x64xf32, #tpu.memory_space<vmem>>, %arg4: memref<64x128xbf16, #tpu.memory_space<vmem>>, %arg5: memref<1x128xf32, #tpu.memory_space<vmem>>, %arg6: memref<8x128xf32, #tpu.memory_space<vmem>>) attributes {dimension_semantics = [#tpu.dimension_semantics<parallel>], iteration_bounds = array<i64: 1>, scalar_prefetch = 0 : i64, scratch_operands = 0 : i64, tpu.core_type = #tpu.core_type<tc>, window_params = [{transform_indices = @transform_0, window_bounds = array<i64: 8, 128>}, {pipeline_mode = #tpu.pipeline_mode<synchronous>, transform_indices = @transform_1, window_bounds = array<i64: 128, 64>}, {pipeline_mode = #tpu.pipeline_mode<synchronous>, transform_indices = @transform_2, window_bounds = array<i64: 1, 64>}, {pipeline_mode = #tpu.pipeline_mode<synchronous>, transform_indices = @transform_3, window_bounds = array<i64: 64, 128>}, {pipeline_mode = #tpu.pipeline_mode<synchronous>, transform_indices = @transform_4, window_bounds = array<i64: 1, 128>}, {transform_indices = @transform_5, window_bounds = array<i64: 8, 128>}]} {
    %c0 = arith.constant 0 : index
    %c0_0 = arith.constant 0 : index
    %0 = vector.load %arg1[%c0, %c0_0] : memref<8x128xbf16, #tpu.memory_space<vmem>>, vector<8x128xbf16>
    %c0_1 = arith.constant 0 : index
    %c0_2 = arith.constant 0 : index
    %1 = vector.load %arg2[%c0_1, %c0_2] : memref<128x64xbf16, #tpu.memory_space<vmem>>, vector<128x64xbf16>
    %cst = arith.constant dense<0.000000e+00> : vector<8x64xf32>
    %2 = tpu.matmul %0, %1, %cst {dimension_numbers = #tpu.dot_dimension_numbers<[1], [0], [0], [1], [0, 0, 1, 1], [], []>} : vector<8x128xbf16>, vector<128x64xbf16>, vector<8x64xf32> -> vector<8x64xf32>
    %c0_3 = arith.constant 0 : index
    %c0_4 = arith.constant 0 : index
    %3 = vector.load %arg3[%c0_3, %c0_4] : memref<1x64xf32, #tpu.memory_space<vmem>>, vector<1x64xf32>
    %4 = vector.broadcast %3 : vector<1x64xf32> to vector<8x64xf32>
    %5 = arith.addf %2, %4 : vector<8x64xf32>
    %cst_5 = arith.constant 0.000000e+00 : f32
    %6 = vector.broadcast %cst_5 : f32 to vector<8x64xf32>
    %7 = arith.maximumf %5, %6 : vector<8x64xf32>
    %8 = arith.truncf %7 : vector<8x64xf32> to vector<8x64xbf16>
    %c0_6 = arith.constant 0 : index
    %c0_7 = arith.constant 0 : index
    %9 = vector.load %arg4[%c0_6, %c0_7] : memref<64x128xbf16, #tpu.memory_space<vmem>>, vector<64x128xbf16>
    %cst_8 = arith.constant dense<0.000000e+00> : vector<8x128xf32>
    %10 = tpu.matmul %8, %9, %cst_8 {dimension_numbers = #tpu.dot_dimension_numbers<[1], [0], [0], [1], [0, 0, 1, 1], [], []>} : vector<8x64xbf16>, vector<64x128xbf16>, vector<8x128xf32> -> vector<8x128xf32>
    %c0_9 = arith.constant 0 : index
    %c0_10 = arith.constant 0 : index
    %11 = vector.load %arg5[%c0_9, %c0_10] : memref<1x128xf32, #tpu.memory_space<vmem>>, vector<1x128xf32>
    %12 = vector.broadcast %11 : vector<1x128xf32> to vector<8x128xf32>
    %13 = arith.addf %10, %12 : vector<8x128xf32>
    %14 = arith.negf %13 : vector<8x128xf32>
    %15 = math.exp %14 : vector<8x128xf32>
    %cst_11 = arith.constant 1.000000e+00 : f32
    %16 = vector.broadcast %cst_11 : f32 to vector<8x128xf32>
    %17 = arith.addf %16, %15 : vector<8x128xf32>
    %18 = arith.divf %16, %17 : vector<8x128xf32>
    %c0_12 = arith.constant 0 : index
    %c0_13 = arith.constant 0 : index
    %19 = vector.load %arg6[%c0_12, %c0_13] : memref<8x128xf32, #tpu.memory_space<vmem>>, vector<8x128xf32>
    tpu.vector_store %arg6[%c0_12, %c0_13], %18 {strides = array<i32>} : memref<8x128xf32, #tpu.memory_space<vmem>>, vector<8x128xf32>,
    return
  }
  func.func @transform_0(%arg0: i32) -> (i32, i32) {
    %c0_i32 = arith.constant 0 : i32
    %c0_i32_0 = arith.constant 0 : i32
    return %arg0, %c0_i32 : i32, i32
  }
  func.func @transform_1(%arg0: i32) -> (i32, i32) {
    %c0_i32 = arith.constant 0 : i32
    %c0_i32_0 = arith.constant 0 : i32
    %c0_i32_1 = arith.constant 0 : i32
    return %c0_i32, %c0_i32_0 : i32, i32
  }
  func.func @transform_2(%arg0: i32) -> (i32, i32) {
    %c0_i32 = arith.constant 0 : i32
    %c0_i32_0 = arith.constant 0 : i32
    %c0_i32_1 = arith.constant 0 : i32
    return %c0_i32, %c0_i32_0 : i32, i32
  }
  func.func @transform_3(%arg0: i32) -> (i32, i32) {
    %c0_i32 = arith.constant 0 : i32
    %c0_i32_0 = arith.constant 0 : i32
    %c0_i32_1 = arith.constant 0 : i32
    return %c0_i32, %c0_i32_0 : i32, i32
  }
  func.func @transform_4(%arg0: i32) -> (i32, i32) {
    %c0_i32 = arith.constant 0 : i32
    %c0_i32_0 = arith.constant 0 : i32
    %c0_i32_1 = arith.constant 0 : i32
    return %c0_i32, %c0_i32_0 : i32, i32
  }
  func.func @transform_5(%arg0: i32) -> (i32, i32) {
    %c0_i32 = arith.constant 0 : i32
    %c0_i32_0 = arith.constant 0 : i32
    return %arg0, %c0_i32 : i32, i32
  }
}

</mosaic_0001>

<llo_original>
// kernel: tpu_custom_call.1
$region0: #{tpu_custom_call.1}
  #allocation0 [shape = 'u32[]', space=smem, size = 0x4, offset = 0x4, fixed_abs, tag = 'smem constant byte address 0x4 - core index']
  #allocation1 [shape = 'u32[144,128]{1,0:T(1,128)}', space=vmem, size = 0x12000, scoped, tag = 'internal scratch']
  %s0 = inlined_call_operand.vmem [shape: bf16[8,128], index: 0, kind: input, shape index: {}]
  %s1 = inlined_call_operand.vmem [shape: bf16[128,64], index: 1, kind: input, shape index: {}]
  %s2 = inlined_call_operand.vmem [shape: f32[1,64], index: 2, kind: input, shape index: {}]
  %s3 = inlined_call_operand.vmem [shape: bf16[64,128], index: 3, kind: input, shape index: {}]
  %s4 = inlined_call_operand.vmem [shape: f32[1,128], index: 4, kind: input, shape index: {}]
  %s5 = inlined_call_operand.hbm [shape: f32[8,128], index: 5, kind: output, shape index: {}]
  %s6 = sld [smem:[#allocation0]]
  $region30: #{tpu_custom_call.1} parent=0
    _
  %s8 = ssub.s32 1, %s6
  %s9 = scalar_select 0, %s8, %s6
  $region1: #{tpu_custom_call.1} parent=0
    #allocation2 [shape = 'u8[4096]{0}', space=vmem, size = 0x1000, scoped, tag = 'output window, operand 0, single buffered']
    #allocation3 [shape = 's32[1]{0}', space=sflag, size = 0x4, scoped, tag = 'scoped memory for tpu_custom_call.1']
    %10 = vsyncpa [#allocation3], 0
    // Predicated region
    $region2: #{tpu_custom_call.1} parent=1 // pred_check
      _
    $region3: #{tpu_custom_call.1} parent=1 // pred_check_branch
      %12 = sbr.rel (0) target = $region5
    $region4: #{tpu_custom_call.1} parent=1 // pred_region
      _
    $region5: #{tpu_custom_call.1} parent=1 // pred_fallthru
      _
    // Predicated region
    $region6: #{tpu_custom_call.1} parent=1 // pred_check
      _
    $region7: #{tpu_custom_call.1} parent=1 // pred_check_branch
      %14 = sbr.rel (0) target = $region9
    $region8: #{tpu_custom_call.1} parent=1 // pred_region
      _
    $region9: #{tpu_custom_call.1} parent=1 // pred_fallthru
      _
    // Predicated region
    $region10: #{tpu_custom_call.1} parent=1 // pred_check
      _
    $region11: #{tpu_custom_call.1} parent=1 // pred_check_branch
      %16 = sbr.rel (0) target = $region13
    $region12: #{tpu_custom_call.1} parent=1 // pred_region
      _
    $region13: #{tpu_custom_call.1} parent=1 // pred_fallthru
      _
    // Predicated region
    $region14: #{tpu_custom_call.1} parent=1 // pred_check
      _
    $region15: #{tpu_custom_call.1} parent=1 // pred_check_branch
      %18 = sbr.rel (0) target = $region17
    $region16: #{tpu_custom_call.1} parent=1 // pred_region
      _
    $region17: #{tpu_custom_call.1} parent=1 // pred_fallthru
      _
    // Predicated region
    $region18: #{tpu_custom_call.1} parent=1 // pred_check
      _
    $region19: #{tpu_custom_call.1} parent=1 // pred_check_branch
      %20 = sbr.rel (0) target = $region21
    $region20: #{tpu_custom_call.1} parent=1 // pred_region
      _
    $region21: #{tpu_custom_call.1} parent=1 // pred_fallthru
      _
    %v22 = vld [vmem:[%s0] sm:$0xf]
    %v23 = vld [vmem:[%s1] sm:$0xf]
    %v24 = vld [vmem:[%s1 + $0x4] sm:$0xf]
    %v25 = vld [vmem:[%s1 + $0x8] sm:$0xf]
    %v26 = vld [vmem:[%s1 + $0xc] sm:$0xf]
    %v27 = vld [vmem:[%s1 + $0x10] sm:$0xf]
    %v28 = vld [vmem:[%s1 + $0x14] sm:$0xf]
    %v29 = vld [vmem:[%s1 + $0x18] sm:$0xf]
    %v30 = vld [vmem:[%s1 + $0x1c] sm:$0xf]
    %v31 = vld [vmem:[%s1 + $0x20] sm:$0xf]
    %v32 = vld [vmem:[%s1 + $0x24] sm:$0xf]
    %v33 = vld [vmem:[%s1 + $0x28] sm:$0xf]
    %v34 = vld [vmem:[%s1 + $0x2c] sm:$0xf]
    %v35 = vld [vmem:[%s1 + $0x30] sm:$0xf]
    %v36 = vld [vmem:[%s1 + $0x34] sm:$0xf]
    %v37 = vld [vmem:[%s1 + $0x38] sm:$0xf]
    %v38 = vld [vmem:[%s1 + $0x3c] sm:$0xf]
    %v39 = vld [vmem:[%s2] sm:$0x1]
    %v41 = vlaneseq
    %v42 = vshrl.u32 %v41, 7
    %v43 = vsub.s32 0, %v42
    %v44 = vrot.slane %v39, %v43
    %v62 = vunpack.c.l.b16 %v23
    %v63 = vunpack.c.l.b16 %v24
    %v64 = vunpack.c.l.b16 %v25
    %v65 = vunpack.c.l.b16 %v26
    %v66 = vunpack.c.l.b16 %v27
    %v67 = vunpack.c.l.b16 %v28
    %v68 = vunpack.c.l.b16 %v29
    %v69 = vunpack.c.l.b16 %v30
    %v70 = vunpack.c.l.b16 %v31
    %v71 = vunpack.c.l.b16 %v32
    %v72 = vunpack.c.l.b16 %v33
    %v73 = vunpack.c.l.b16 %v34
    %v74 = vunpack.c.l.b16 %v35
    %v75 = vunpack.c.l.b16 %v36
    %v76 = vunpack.c.l.b16 %v37
    %v77 = vunpack.c.l.b16 %v38
    %v78 = vpack.c.b16 %v63, %v62
    %v79 = vpack.c.b16 %v65, %v64
    %v80 = vpack.c.b16 %v67, %v66
    %v81 = vpack.c.b16 %v69, %v68
    %v82 = vpack.c.b16 %v71, %v70
    %v83 = vpack.c.b16 %v73, %v72
    %v84 = vpack.c.b16 %v75, %v74
    %v85 = vpack.c.b16 %v77, %v76
    %94 = vmatprep.subr.bf16.mxu0 0
    %95 = vmatpush1.bf16.msra.mxu0 %v78
    %96 = vmatprep.subr.bf16.mxu0 0
    %97 = vmatpush1.bf16.msra.mxu0 %v79
    %98 = vmatprep.subr.bf16.mxu0 0
    %99 = vmatpush1.bf16.msra.mxu0 %v80
    %100 = vmatprep.subr.bf16.mxu0 0
    %101 = vmatpush1.bf16.msra.mxu0 %v81
    %102 = vmatprep.subr.bf16.mxu0 0
    %103 = vmatpush1.bf16.msra.mxu0 %v82
    %104 = vmatprep.subr.bf16.mxu0 0
    %105 = vmatpush1.bf16.msra.mxu0 %v83
    %106 = vmatprep.subr.bf16.mxu0 0
    %107 = vmatpush1.bf16.msra.mxu0 %v84
    %108 = vmatprep.subr.bf16.mxu0 0
    %109 = vmatpush1.bf16.msra.mxu0 %v85
    %110 = vmatprep.subr.bf16.mxu0 0
    %111 = vmatpush1.bf16.msra.mxu0 0
    %112 = vmatprep.subr.bf16.mxu0 0
    %113 = vmatpush1.bf16.msra.mxu0 0
    %114 = vmatprep.subr.bf16.mxu0 0
    %115 = vmatpush1.bf16.msra.mxu0 0
    %116 = vmatprep.subr.bf16.mxu0 0
    %117 = vmatpush1.bf16.msra.mxu0 0
    %118 = vmatprep.subr.bf16.mxu0 0
    %119 = vmatpush1.bf16.msra.mxu0 0
    %120 = vmatprep.subr.bf16.mxu0 0
    %121 = vmatpush1.bf16.msra.mxu0 0
    %122 = vmatprep.subr.bf16.mxu0 0
    %123 = vmatpush1.bf16.msra.mxu0 0
    %124 = vmatprep.subr.bf16.mxu0 0
    %125 = vmatpush1.bf16.msra.mxu0 0
    %126 = vmatprep.mubr.bf16.mxu0 0
    %127 = vmatmul.mubr.bf16.gmra.mrb[0].mxu0 %v22
    %v128 = vpop.f32.mrb[0].mxu0
    %v129 = vadd.f32 %v44, %v128
    %v130 = vpop.f32.mrb[0].mxu0
    %v131 = vpop.f32.mrb[0].mxu0
    %v132 = vpop.f32.mrb[0].mxu0
    %133 = vdwg.mxu0
    %v134 = vmax.f32 %v129, 0.0
    %v135 = vpack.c.bf16 %v134, %v134
    %v136 = vld [vmem:[%s3] sm:$0xf]
    %v137 = vld [vmem:[%s3 + $0x4] sm:$0xf]
    %v138 = vld [vmem:[%s3 + $0x8] sm:$0xf]
    %v139 = vld [vmem:[%s3 + $0xc] sm:$0xf]
    %v140 = vld [vmem:[%s3 + $0x10] sm:$0xf]
    %v141 = vld [vmem:[%s3 + $0x14] sm:$0xf]
    %v142 = vld [vmem:[%s3 + $0x18] sm:$0xf]
    %v143 = vld [vmem:[%s3 + $0x1c] sm:$0xf]
    %v144 = vld [vmem:[%s4] sm:$0x1]
    %v146 = vlaneseq
    %v147 = vshrl.u32 %v146, 7
    %v148 = vsub.s32 0, %v147
    %v149 = vrot.slane %v144, %v148
    %v159 = vunpack.c.l.b16 %v136
    %v160 = vunpack.c.l.b16 %v137
    %v161 = vunpack.c.l.b16 %v138
    %v162 = vunpack.c.l.b16 %v139
    %v163 = vunpack.c.l.b16 %v140
    %v164 = vunpack.c.l.b16 %v141
    %v165 = vunpack.c.l.b16 %v142
    %v166 = vunpack.c.l.b16 %v143
    %v167 = vpack.c.b16 %v160, %v159
    %v168 = vpack.c.b16 %v162, %v161
    %v169 = vpack.c.b16 %v164, %v163
    %v170 = vpack.c.b16 %v166, %v165
    %vm175 = vcmask 523264
    %v177 = vsel %vm175, %v135, 0
    %179 = vmatprep.subr.bf16.mxu0 0
    %180 = vmatpush1.bf16.msra.mxu0 %v167
    %181 = vmatprep.subr.bf16.mxu0 0
    %182 = vmatpush1.bf16.msra.mxu0 %v168
    %183 = vmatprep.subr.bf16.mxu0 0
    %184 = vmatpush1.bf16.msra.mxu0 %v169
    %185 = vmatprep.subr.bf16.mxu0 0
    %186 = vmatpush1.bf16.msra.mxu0 %v170
    %187 = vmatprep.subr.bf16.mxu0 0
    %188 = vmatpush1.bf16.msra.mxu0 0
    %189 = vmatprep.subr.bf16.mxu0 0
    %190 = vmatpush1.bf16.msra.mxu0 0
    %191 = vmatprep.subr.bf16.mxu0 0
    %192 = vmatpush1.bf16.msra.mxu0 0
    %193 = vmatprep.subr.bf16.mxu0 0
    %194 = vmatpush1.bf16.msra.mxu0 0
    %195 = vmatprep.subr.bf16.mxu0 0
    %196 = vmatpush1.bf16.msra.mxu0 0
    %197 = vmatprep.subr.bf16.mxu0 0
    %198 = vmatpush1.bf16.msra.mxu0 0
    %199 = vmatprep.subr.bf16.mxu0 0
    %200 = vmatpush1.bf16.msra.mxu0 0
    %201 = vmatprep.subr.bf16.mxu0 0
    %202 = vmatpush1.bf16.msra.mxu0 0
    %203 = vmatprep.subr.bf16.mxu0 0
    %204 = vmatpush1.bf16.msra.mxu0 0
    %205 = vmatprep.subr.bf16.mxu0 0
    %206 = vmatpush1.bf16.msra.mxu0 0
    %207 = vmatprep.subr.bf16.mxu0 0
    %208 = vmatpush1.bf16.msra.mxu0 0
    %209 = vmatprep.subr.bf16.mxu0 0
    %210 = vmatpush1.bf16.msra.mxu0 0
    %211 = vmatprep.mubr.bf16.mxu0 0
    %212 = vmatmul.mubr.bf16.gmra.mrb[0].mxu0 %v177
    %v213 = vpop.f32.mrb[0].mxu0
    %v214 = vadd.f32 %v149, %v213
    %v215 = vpop.f32.mrb[0].mxu0
    %v216 = vpop.f32.mrb[0].mxu0
    %v217 = vpop.f32.mrb[0].mxu0
    %218 = vdwg.mxu0
    %v219 = vxor.u32 %v214, 2147483648
    %v220 = vmul.f32 %v219, 1.442695
    %v221 = vpow.pop %v220
    %v222 = vadd.f32 %v221, 1.0
    %v223 = vrcp.pop %v222
    %v224 = vmul.f32 1.0, %v223
    %225 = vst [vmem:[#allocation2] sm:$0xff] %v224
    // Predicated region
    $region22: #{tpu_custom_call.1} parent=1 // pred_check
      _
    $region23: #{tpu_custom_call.1} parent=1 // pred_check_branch
      %227 = sbr.rel (0) target = $region25
    $region24: #{tpu_custom_call.1} parent=1 // pred_region
      %s229 = ssub.s32 128, 128
      %230 = vsyncadd [#allocation3], %s229
      %s232 = sshll.u32 [#allocation2], 4
      %s233 = int_to_ptr.vmem [resolvable:$true] %s232
      %235 = dma.vmem_to_hbm [thread:$0]  %s233, 128, %s5, [#allocation3]
    $region25: #{tpu_custom_call.1} parent=1 // pred_fallthru
      _
    // Predicated region
    $region26: #{tpu_custom_call.1} parent=1 // pred_check
      _
    $region27: #{tpu_custom_call.1} parent=1 // pred_check_branch
      %237 = sbr.rel (0) target = $region29
    $region28: #{tpu_custom_call.1} parent=1 // pred_region
      %238 = dma.done [#allocation3], 128
    $region29: #{tpu_custom_call.1} parent=1 // pred_fallthru
      _
    %239 = vsyncpa [#allocation3], 1

</llo_original>
